<compile_context>
chip_gen: v6e
topology: v6e:2x2x1
jax: 0.10.0
libtpu: 0.0.40
codegen_flags: <defaults>
</compile_context>

<pallas_src>
import functools
import math

import jax
import jax.numpy as jnp
from jax.experimental import pallas as pl
from jax.experimental.pallas import tpu as pltpu

# Deterministic "buffers" of the module (minimum/maximum proportions).
MINIMUM = 0.1
MAXIMUM = 0.9


def _box_size_prior_kernel(logits_ref, masks_ref, out_ref, *,
                           tb, n_boxes, ppad, n_classes, n_rows):
    """One grid step = TB consecutive (batch, class) rows.

    logits_ref: (TB, Ppad)      softmax logits (any float dtype)
    masks_ref : (TB, N*Ppad)    binary box masks, box n lives in lanes [n*Ppad, (n+1)*Ppad)
    out_ref   : (1, 8, 128)     per-step partial sum broadcast into a lane-dense slab
    """
    logit = logits_ref[...].astype(jnp.float32)                       # (TB, Ppad)

    # Foreground / in-bounds gate regenerated in-kernel (3 cheap VPU ops instead of
    # a fragmented (TB,1,1) side input): class index 0 rows and cdiv-tail rows -> 0.
    row0 = pl.program_id(0) * tb
    gidx = row0 + jax.lax.broadcasted_iota(jnp.int32, (tb, 1), 0)     # (TB, 1)
    valid = ((gidx % n_classes) != 0) & (gidx < n_rows)               # (TB, 1)

    err = jnp.zeros((tb, 1), jnp.float32)
    # N is small & static: a static Python loop over 128-aligned lane slices keeps
    # the f32 working set at ~3 * TB*Ppad instead of TB*Npad8*Ppad.
    # TODO(synk): if a bundle dump shows the VALU slot is the binder (v6e/v7x), move
    # both P-reductions onto the idle MXU via a batched dot against [logit, ones].
    for n in range(n_boxes):
        m = masks_ref[:, pl.ds(n * ppad, ppad)].astype(jnp.float32)   # (TB, Ppad)
        box_size = jnp.sum(m, axis=-1, keepdims=True)                 # (TB, 1)
        actual = jnp.sum(m * logit, axis=-1, keepdims=True)           # (TB, 1)
        d_hi = actual - MAXIMUM * box_size
        d_lo = MINIMUM * box_size - actual
        # InequalityL2Penalty: where(v >= 0, v^2, 0)
        err = (err
               + jnp.where(d_hi >= 0, d_hi * d_hi, 0.0)
               + jnp.where(d_lo >= 0, d_lo * d_lo, 0.0))

    err = jnp.where(valid, err, 0.0)   # select (not multiply) -> NaN-safe for garbage tail rows
    s = jnp.sum(err)

    # Lane-dense (8,128) partial-sum slab; the wrapper reads element [i, 0, 0].
    out_ref[...] = jnp.broadcast_to(s, (1, 8, 128))


def _round_up(x, m):
    return ((x + m - 1) // m) * m


def _vmem_footprint(tb, n_boxes, ppad, mask_item, logit_item):
    """Padding-aware VMEM estimate for one grid step (double-buffered inputs + f32 work)."""
    sub_mask = _round_up(tb, max(8, 32 // mask_item))     # int8 -> (32,128) tile, bf16 -> 16, f32 -> 8
    sub_logit = _round_up(tb, max(8, 32 // logit_item))
    sub_f32 = _round_up(tb, 8)
    raw = (2 * sub_mask * n_boxes * ppad * mask_item      # masks double buffer
           + 2 * sub_logit * ppad * logit_item)           # logits double buffer
    work = 3 * sub_f32 * ppad * 4 + 8 * sub_f32 * 128 * 4  # f32 temporaries (m, m*logit, logit, per-row vecs)
    out = 2 * 8 * 128 * 4
    return raw + work + out


def box_size_prior_loss(logits, box_masks):
    """reduction='original' forward pass of BoxSizePriorLoss.

    logits:    (B, C, H, W[, D]) float (softmax outputs; bf16 accepted directly)
    box_masks: (B, C, N, H, W[, D]) {0,1} masks (dense stand-in for the sparse masks);
               int8 / bool / float accepted (narrow dtypes save HBM bandwidth)
    """
    B, C = logits.shape[:2]
    N = box_masks.shape[2]
    spatial = logits.shape[2:]
    P = int(math.prod(spatial))

    if N == 0 or C <= 1:
        # No boxes / no foreground classes -> masked logits sum to zero.
        return jnp.zeros((), jnp.float32)

    if box_masks.dtype == jnp.bool_:
        box_masks = box_masks.astype(jnp.int8)

    BC = B * C
    Ppad = _round_up(P, 128)   # keep the lane dim dense (zeros contribute nothing)

    # Contiguous reshapes (free); padding only materializes when P % 128 != 0.
    logits_r = logits.reshape(BC, P)
    masks_r = box_masks.reshape(BC, N, P)
    if Ppad != P:
        logits_r = jnp.pad(logits_r, ((0, 0), (0, Ppad - P)))
        masks_r = jnp.pad(masks_r, ((0, 0), (0, 0), (0, Ppad - P)))
    masks_r = masks_r.reshape(BC, N * Ppad)   # dense 2D block: no small-N sublane padding

    mask_item = jnp.dtype(masks_r.dtype).itemsize
    logit_item = jnp.dtype(logits_r.dtype).itemsize

    # Pick TB: biggest multiple of 8 whose live footprint fits a ~16 MiB block budget,
    # capped at ~BC/2 so G >= 2 and the "parallel" axis can feed both v7x TensorCores.
    BUDGET = 16 * 1024 * 1024
    if BC <= 8:
        TB = BC
    else:
        bytes_per_row = (2 * N * Ppad * mask_item + 2 * Ppad * logit_item
                         + 3 * Ppad * 4 + 4096)
        cap = max(8, (BUDGET // bytes_per_row) // 8 * 8)
        half = max(8, _round_up((BC + 1) // 2, 8))
        TB = int(min(cap, half))
    G = int(pl.cdiv(BC, TB))

    footprint = _vmem_footprint(TB, N, Ppad, mask_item, logit_item)
    # Cap at 64 MiB = v7x per-TC physical VMEM; v5e/v6e have plenty of headroom.
    vmem_limit = int(min(64 * 1024 * 1024,
                         max(32 * 1024 * 1024, footprint + 4 * 1024 * 1024)))
    # TODO(synk): very large spatial extents (footprint > 64 MiB even at TB=8) would
    # need an extra 'arbitrary' grid axis tiling Ppad with (box_size, actual) scratch
    # accumulators; not implemented here.

    kernel = functools.partial(_box_size_prior_kernel, tb=TB, n_boxes=N,
                               ppad=Ppad, n_classes=C, n_rows=BC)

    cost = pl.CostEstimate(
        flops=int(4 * BC * N * Ppad),
        transcendentals=0,
        bytes_accessed=int(masks_r.size * mask_item + logits_r.size * logit_item
                           + G * 8 * 128 * 4),
    )

    partials = pl.pallas_call(
        kernel,
        out_shape=jax.ShapeDtypeStruct((G, 8, 128), jnp.float32),
        grid_spec=pltpu.PrefetchScalarGridSpec(
            num_scalar_prefetch=0,
            grid=(G,),
            in_specs=[
                pl.BlockSpec((TB, Ppad), lambda i: (i, 0)),        # logits, dense 2D
                pl.BlockSpec((TB, N * Ppad), lambda i: (i, 0)),    # masks, dense 2D, contiguous DMA
            ],
            out_specs=pl.BlockSpec((1, 8, 128), lambda i: (i, 0, 0)),
        ),
        compiler_params=pltpu.CompilerParams(
            dimension_semantics=("parallel",),   # independent partial sums per step (shards across v7x TCs)
            vmem_limit_bytes=vmem_limit,
        ),
        cost_estimate=cost,
    )(logits_r, masks_r)

    err_sum = jnp.sum(partials[:, 0, 0])

    # reduction='original': sum(error) / prod(fg_logits.shape[-3:])
    fg_shape = (B, C - 1) + tuple(spatial)
    return err_sum / float(math.prod(fg_shape[-3:]))

    # TODO(synk): 'mean'/'sum' reductions use a bitwise-or (`box_sizes | ones`) on
    # integer box sizes; only the default 'original' reduction is implemented here.


def _reference(logits, box_masks):
    """Plain-JAX reference of the same forward pass (for a sanity check)."""
    fg_logits = logits[:, 1:].astype(jnp.float32)
    fg_masks = box_masks[:, 1:].astype(jnp.float32)
    box_sizes = jnp.sum(fg_masks, axis=(3, 4))
    actual = jnp.sum(fg_logits[:, :, None] * fg_masks, axis=(3, 4))

    def pen(v):
        return jnp.where(v >= 0, v * v, 0.0)

    err = pen(actual - MAXIMUM * box_sizes) + pen(MINIMUM * box_sizes - actual)
    return jnp.sum(err) / float(math.prod(fg_logits.shape[-3:]))


if __name__ == "__main__":
    B, C, N, H, W = 2, 4, 3, 16, 16
    key = jax.random.PRNGKey(0)
    k_logits, k_masks = jax.random.split(key)

    # Softmax logits over the class axis (as the module expects softmax outputs).
    raw = jax.random.normal(k_logits, (B, C, H, W), dtype=jnp.float32)
    logits = jax.nn.softmax(raw, axis=1)

    # Deterministic binary box masks kept in int8 (4x fewer HBM bytes than f32).
    box_masks = jax.random.bernoulli(k_masks, p=0.3, shape=(B, C, N, H, W)).astype(
        jnp.int8
    )

    loss = jax.block_until_ready(box_size_prior_loss(logits, box_masks))
    ref = jax.block_until_ready(_reference(logits, box_masks))
    assert jnp.allclose(loss, ref, rtol=1e-5, atol=1e-5), (loss, ref)

    print("KERNEL_OK")
</pallas_src>

<mosaic_0001>
module attributes {stable_mosaic.version = 11 : i64} {
  func.func @_box_size_prior_kernel(%arg0: i32, %arg1: memref<8x256xf32, #tpu.memory_space<vmem>>, %arg2: memref<8x768xi8, #tpu.memory_space<vmem>>, %arg3: memref<1x8x128xf32, #tpu.memory_space<vmem>>) attributes {dimension_semantics = [#tpu.dimension_semantics<parallel>], iteration_bounds = array<i64: 1>, scalar_prefetch = 0 : i64, scratch_operands = 0 : i64, tpu.core_type = #tpu.core_type<tc>, window_params = [{transform_indices = @transform_0, window_bounds = array<i64: 8, 256>}, {transform_indices = @transform_1, window_bounds = array<i64: 8, 768>}, {transform_indices = @transform_2, window_bounds = array<i64: 1, 8, 128>}]} {
    %c0 = arith.constant 0 : index
    %c0_0 = arith.constant 0 : index
    %0 = vector.load %arg1[%c0, %c0_0] : memref<8x256xf32, #tpu.memory_space<vmem>>, vector<8x256xf32>
    %c8_i32 = arith.constant 8 : i32
    %1 = arith.muli %arg0, %c8_i32 : i32
    %2 = tpu.iota {dimensions = array<i32: 0>} : vector<8x1xi32>
    %3 = vector.broadcast %1 : i32 to vector<8x1xi32>
    %4 = arith.addi %3, %2 : vector<8x1xi32>
    %c4_i32 = arith.constant 4 : i32
    %c0_i32 = arith.constant 0 : i32
    %5 = arith.cmpi eq, %c4_i32, %c0_i32 : i32
    %c1_i32 = arith.constant 1 : i32
    %6 = arith.select %5, %c1_i32, %c4_i32 : i32
    %7 = vector.broadcast %6 : i32 to vector<8x1xi32>
    %8 = arith.remsi %4, %7 : vector<8x1xi32>
    %c0_i32_1 = arith.constant 0 : i32
    %9 = vector.broadcast %c0_i32_1 : i32 to vector<8x1xi32>
    %10 = arith.cmpi ne, %8, %9 : vector<8x1xi32>
    %c0_i32_2 = arith.constant 0 : i32
    %11 = vector.broadcast %c0_i32_2 : i32 to vector<8x1xi32>
    %12 = arith.cmpi slt, %8, %11 : vector<8x1xi32>
    %c0_i32_3 = arith.constant 0 : i32
    %13 = arith.cmpi slt, %6, %c0_i32_3 : i32
    %14 = vector.broadcast %13 : i1 to vector<8x1xi1>
    %15 = vector.broadcast %14 : vector<8x1xi1> to vector<8x1xi1>
    %16 = arith.xori %12, %15 : vector<8x1xi1>
    %17 = arith.andi %16, %10 : vector<8x1xi1>
    %18 = vector.broadcast %6 : i32 to vector<8x1xi32>
    %19 = arith.addi %8, %18 : vector<8x1xi32>
    %20 = arith.select %17, %19, %8 : vector<8x1xi1>, vector<8x1xi32>
    %c0_i32_4 = arith.constant 0 : i32
    %21 = vector.broadcast %c0_i32_4 : i32 to vector<8x1xi32>
    %22 = arith.cmpi ne, %20, %21 : vector<8x1xi32>
    %c8_i32_5 = arith.constant 8 : i32
    %23 = vector.broadcast %c8_i32_5 : i32 to vector<8x1xi32>
    %24 = arith.cmpi slt, %4, %23 : vector<8x1xi32>
    %25 = arith.andi %22, %24 : vector<8x1xi1>
    %cst = arith.constant 0.000000e+00 : f32
    %26 = vector.broadcast %cst : f32 to vector<8x1xf32>
    %c0_6 = arith.constant 0 : index
    %c0_7 = arith.constant 0 : index
    %27 = vector.load %arg2[%c0_6, %c0_7] : memref<8x768xi8, #tpu.memory_space<vmem>>, vector<8x256xi8>
    %28 = arith.sitofp %27 : vector<8x256xi8> to vector<8x256xf32>
    %cst_8 = arith.constant dense<0.000000e+00> : vector<8xf32>
    %29 = vector.multi_reduction <add>, %28, %cst_8 [1] : vector<8x256xf32> to vector<8xf32>
    %30 = vector.shape_cast %29 : vector<8xf32> to vector<8x1xf32>
    %31 = arith.mulf %28, %0 : vector<8x256xf32>
    %cst_9 = arith.constant dense<0.000000e+00> : vector<8xf32>
    %32 = vector.multi_reduction <add>, %31, %cst_9 [1] : vector<8x256xf32> to vector<8xf32>
    %33 = vector.shape_cast %32 : vector<8xf32> to vector<8x1xf32>
    %cst_10 = arith.constant 0.899999976 : f32
    %34 = vector.broadcast %cst_10 : f32 to vector<8x1xf32>
    %35 = arith.mulf %34, %30 : vector<8x1xf32>
    %36 = arith.subf %33, %35 : vector<8x1xf32>
    %cst_11 = arith.constant 1.000000e-01 : f32
    %37 = vector.broadcast %cst_11 : f32 to vector<8x1xf32>
    %38 = arith.mulf %37, %30 : vector<8x1xf32>
    %39 = arith.subf %38, %33 : vector<8x1xf32>
    %cst_12 = arith.constant 0.000000e+00 : f32
    %40 = vector.broadcast %cst_12 : f32 to vector<8x1xf32>
    %41 = arith.cmpf oge, %36, %40 : vector<8x1xf32>
    %42 = arith.mulf %36, %36 : vector<8x1xf32>
    %cst_13 = arith.constant 0.000000e+00 : f32
    %43 = vector.broadcast %cst_13 : f32 to vector<8x1xf32>
    %44 = arith.select %41, %42, %43 : vector<8x1xi1>, vector<8x1xf32>
    %45 = arith.addf %26, %44 : vector<8x1xf32>
    %cst_14 = arith.constant 0.000000e+00 : f32
    %46 = vector.broadcast %cst_14 : f32 to vector<8x1xf32>
    %47 = arith.cmpf oge, %39, %46 : vector<8x1xf32>
    %48 = arith.mulf %39, %39 : vector<8x1xf32>
    %cst_15 = arith.constant 0.000000e+00 : f32
    %49 = vector.broadcast %cst_15 : f32 to vector<8x1xf32>
    %50 = arith.select %47, %48, %49 : vector<8x1xi1>, vector<8x1xf32>
    %51 = arith.addf %45, %50 : vector<8x1xf32>
    %c0_16 = arith.constant 0 : index
    %c256 = arith.constant 256 : index
    %52 = vector.load %arg2[%c0_16, %c256] : memref<8x768xi8, #tpu.memory_space<vmem>>, vector<8x256xi8>
    %53 = arith.sitofp %52 : vector<8x256xi8> to vector<8x256xf32>
    %cst_17 = arith.constant dense<0.000000e+00> : vector<8xf32>
    %54 = vector.multi_reduction <add>, %53, %cst_17 [1] : vector<8x256xf32> to vector<8xf32>
    %55 = vector.shape_cast %54 : vector<8xf32> to vector<8x1xf32>
    %56 = arith.mulf %53, %0 : vector<8x256xf32>
    %cst_18 = arith.constant dense<0.000000e+00> : vector<8xf32>
    %57 = vector.multi_reduction <add>, %56, %cst_18 [1] : vector<8x256xf32> to vector<8xf32>
    %58 = vector.shape_cast %57 : vector<8xf32> to vector<8x1xf32>
    %cst_19 = arith.constant 0.899999976 : f32
    %59 = vector.broadcast %cst_19 : f32 to vector<8x1xf32>
    %60 = arith.mulf %59, %55 : vector<8x1xf32>
    %61 = arith.subf %58, %60 : vector<8x1xf32>
    %cst_20 = arith.constant 1.000000e-01 : f32
    %62 = vector.broadcast %cst_20 : f32 to vector<8x1xf32>
    %63 = arith.mulf %62, %55 : vector<8x1xf32>
    %64 = arith.subf %63, %58 : vector<8x1xf32>
    %cst_21 = arith.constant 0.000000e+00 : f32
    %65 = vector.broadcast %cst_21 : f32 to vector<8x1xf32>
    %66 = arith.cmpf oge, %61, %65 : vector<8x1xf32>
    %67 = arith.mulf %61, %61 : vector<8x1xf32>
    %cst_22 = arith.constant 0.000000e+00 : f32
    %68 = vector.broadcast %cst_22 : f32 to vector<8x1xf32>
    %69 = arith.select %66, %67, %68 : vector<8x1xi1>, vector<8x1xf32>
    %70 = arith.addf %51, %69 : vector<8x1xf32>
    %cst_23 = arith.constant 0.000000e+00 : f32
    %71 = vector.broadcast %cst_23 : f32 to vector<8x1xf32>
    %72 = arith.cmpf oge, %64, %71 : vector<8x1xf32>
    %73 = arith.mulf %64, %64 : vector<8x1xf32>
    %cst_24 = arith.constant 0.000000e+00 : f32
    %74 = vector.broadcast %cst_24 : f32 to vector<8x1xf32>
    %75 = arith.select %72, %73, %74 : vector<8x1xi1>, vector<8x1xf32>
    %76 = arith.addf %70, %75 : vector<8x1xf32>
    %c0_25 = arith.constant 0 : index
    %c512 = arith.constant 512 : index
    %77 = vector.load %arg2[%c0_25, %c512] : memref<8x768xi8, #tpu.memory_space<vmem>>, vector<8x256xi8>
    %78 = arith.sitofp %77 : vector<8x256xi8> to vector<8x256xf32>
    %cst_26 = arith.constant dense<0.000000e+00> : vector<8xf32>
    %79 = vector.multi_reduction <add>, %78, %cst_26 [1] : vector<8x256xf32> to vector<8xf32>
    %80 = vector.shape_cast %79 : vector<8xf32> to vector<8x1xf32>
    %81 = arith.mulf %78, %0 : vector<8x256xf32>
    %cst_27 = arith.constant dense<0.000000e+00> : vector<8xf32>
    %82 = vector.multi_reduction <add>, %81, %cst_27 [1] : vector<8x256xf32> to vector<8xf32>
    %83 = vector.shape_cast %82 : vector<8xf32> to vector<8x1xf32>
    %cst_28 = arith.constant 0.899999976 : f32
    %84 = vector.broadcast %cst_28 : f32 to vector<8x1xf32>
    %85 = arith.mulf %84, %80 : vector<8x1xf32>
    %86 = arith.subf %83, %85 : vector<8x1xf32>
    %cst_29 = arith.constant 1.000000e-01 : f32
    %87 = vector.broadcast %cst_29 : f32 to vector<8x1xf32>
    %88 = arith.mulf %87, %80 : vector<8x1xf32>
    %89 = arith.subf %88, %83 : vector<8x1xf32>
    %cst_30 = arith.constant 0.000000e+00 : f32
    %90 = vector.broadcast %cst_30 : f32 to vector<8x1xf32>
    %91 = arith.cmpf oge, %86, %90 : vector<8x1xf32>
    %92 = arith.mulf %86, %86 : vector<8x1xf32>
    %cst_31 = arith.constant 0.000000e+00 : f32
    %93 = vector.broadcast %cst_31 : f32 to vector<8x1xf32>
    %94 = arith.select %91, %92, %93 : vector<8x1xi1>, vector<8x1xf32>
    %95 = arith.addf %76, %94 : vector<8x1xf32>
    %cst_32 = arith.constant 0.000000e+00 : f32
    %96 = vector.broadcast %cst_32 : f32 to vector<8x1xf32>
    %97 = arith.cmpf oge, %89, %96 : vector<8x1xf32>
    %98 = arith.mulf %89, %89 : vector<8x1xf32>
    %cst_33 = arith.constant 0.000000e+00 : f32
    %99 = vector.broadcast %cst_33 : f32 to vector<8x1xf32>
    %100 = arith.select %97, %98, %99 : vector<8x1xi1>, vector<8x1xf32>
    %101 = arith.addf %95, %100 : vector<8x1xf32>
    %cst_34 = arith.constant 0.000000e+00 : f32
    %102 = vector.broadcast %cst_34 : f32 to vector<8x1xf32>
    %103 = arith.select %25, %101, %102 : vector<8x1xi1>, vector<8x1xf32>
    %104 = vector.shape_cast %103 : vector<8x1xf32> to vector<1x8x1xf32>
    %cst_35 = arith.constant dense<0.000000e+00> : vector<1xf32>
    %105 = vector.multi_reduction <add>, %104, %cst_35 [1, 2] : vector<1x8x1xf32> to vector<1xf32>
    %106 = vector.shape_cast %105 : vector<1xf32> to vector<1x1x1xf32>
    %107 = vector.extract %106[0, 0, 0] : f32 from vector<1x1x1xf32>
    %108 = vector.broadcast %107 : f32 to vector<1x8x128xf32>
    %c0_36 = arith.constant 0 : index
    %c0_37 = arith.constant 0 : index
    %c0_38 = arith.constant 0 : index
    %109 = vector.load %arg3[%c0_36, %c0_37, %c0_38] : memref<1x8x128xf32, #tpu.memory_space<vmem>>, vector<1x8x128xf32>
    tpu.vector_store %arg3[%c0_36, %c0_37, %c0_38], %108 {strides = array<i32>} : memref<1x8x128xf32, #tpu.memory_space<vmem>>, vector<1x8x128xf32>,
    return
  }
  func.func @transform_0(%arg0: i32) -> (i32, i32) {
    %c0_i32 = arith.constant 0 : i32
    %c0_i32_0 = arith.constant 0 : i32
    return %arg0, %c0_i32 : i32, i32
  }
  func.func @transform_1(%arg0: i32) -> (i32, i32) {
    %c0_i32 = arith.constant 0 : i32
    %c0_i32_0 = arith.constant 0 : i32
    return %arg0, %c0_i32 : i32, i32
  }
  func.func @transform_2(%arg0: i32) -> (i32, i32, i32) {
    %c0_i32 = arith.constant 0 : i32
    %c0_i32_0 = arith.constant 0 : i32
    %c0_i32_1 = arith.constant 0 : i32
    return %arg0, %c0_i32, %c0_i32_0 : i32, i32, i32
  }
}

</mosaic_0001>

<llo_original>
// kernel: tpu_custom_call.1
$region0: #{tpu_custom_call.1}
  #allocation0 [shape = 'u32[]', space=smem, size = 0x4, offset = 0x4, fixed_abs, tag = 'smem constant byte address 0x4 - core index']
  #allocation1 [shape = 'u32[144,128]{1,0:T(1,128)}', space=vmem, size = 0x12000, scoped, tag = 'internal scratch']
  %s0 = inlined_call_operand.hbm [shape: f32[8,256], index: 0, kind: input, shape index: {}]
  %s1 = inlined_call_operand.hbm [shape: s8[8,768], index: 1, kind: input, shape index: {}]
  %s2 = inlined_call_operand.hbm [shape: f32[1,8,128], index: 2, kind: output, shape index: {}]
  %s3 = sld [smem:[#allocation0]]
  $region26: #{tpu_custom_call.1} parent=0
    _
  %s5 = ssub.s32 1, %s3
  %s6 = scalar_select 0, %s5, %s3
  $region1: #{tpu_custom_call.1} parent=0
    #allocation2 [shape = 'u8[8192]{0}', space=vmem, size = 0x2000, scoped, tag = 'input window, operand 0, single buffered']
    #allocation3 [shape = 's32[1]{0}', space=sflag, size = 0x4, scoped, tag = 'scoped memory for tpu_custom_call.1']
    #allocation4 [shape = 's32[1]{0}', space=sflag, size = 0x4, scoped, tag = 'scoped memory for tpu_custom_call.1']
    #allocation5 [shape = 'u8[6144]{0}', space=vmem, size = 0x1800, scoped, tag = 'input window, operand 1, single buffered']
    #allocation6 [shape = 's32[1]{0}', space=sflag, size = 0x4, scoped, tag = 'scoped memory for tpu_custom_call.1']
    #allocation7 [shape = 'u8[4096]{0}', space=vmem, size = 0x1000, scoped, tag = 'output window, operand 0, single buffered']
    %7 = vsyncpa [#allocation3], 0
    %8 = vsyncpa [#allocation6], 0
    %9 = vsyncpa [#allocation4], 0
    // Predicated region
    $region2: #{tpu_custom_call.1} parent=1 // pred_check
      _
    $region3: #{tpu_custom_call.1} parent=1 // pred_check_branch
      %11 = sbr.rel (0) target = $region5
    $region4: #{tpu_custom_call.1} parent=1 // pred_region
      %s13 = ssub.s32 256, 256
      %14 = vsyncadd [#allocation3], %s13
      %s16 = sshll.u32 [#allocation2], 4
      %s17 = int_to_ptr.vmem [resolvable:$true] %s16
      %19 = dma.hbm_to_vmem [thread:$0]  %s0, 256, %s17, [#allocation3]
    $region5: #{tpu_custom_call.1} parent=1 // pred_fallthru
      _
    // Predicated region
    $region6: #{tpu_custom_call.1} parent=1 // pred_check
      _
    $region7: #{tpu_custom_call.1} parent=1 // pred_check_branch
      %21 = sbr.rel (0) target = $region9
    $region8: #{tpu_custom_call.1} parent=1 // pred_region
      %s23 = ssub.s32 192, 192
      %24 = vsyncadd [#allocation6], %s23
      %s26 = sshll.u32 [#allocation5], 4
      %s27 = int_to_ptr.vmem [resolvable:$true] %s26
      %29 = dma.hbm_to_vmem [thread:$0]  %s1, 192, %s27, [#allocation6]
    $region9: #{tpu_custom_call.1} parent=1 // pred_fallthru
      _
    // Predicated region
    $region10: #{tpu_custom_call.1} parent=1 // pred_check
      _
    $region11: #{tpu_custom_call.1} parent=1 // pred_check_branch
      %31 = sbr.rel (0) target = $region13
    $region12: #{tpu_custom_call.1} parent=1 // pred_region
      %32 = dma.done [#allocation3], 256
    $region13: #{tpu_custom_call.1} parent=1 // pred_fallthru
      _
    // Predicated region
    $region14: #{tpu_custom_call.1} parent=1 // pred_check
      _
    $region15: #{tpu_custom_call.1} parent=1 // pred_check_branch
      %34 = sbr.rel (0) target = $region17
    $region16: #{tpu_custom_call.1} parent=1 // pred_region
      %35 = dma.done [#allocation6], 192
    $region17: #{tpu_custom_call.1} parent=1 // pred_fallthru
      _
    %v36 = vld [vmem:[#allocation2] sm:$0xff]
    %v37 = vld [vmem:[#allocation2 + $0x8] sm:$0xff]
    %s38 = smul.u32 0, 8
    %v39 = vlaneseq
    %v40 = vshrl.u32 %v39, 7
    %v41 = vstv %s38
    %v42 = vadd.s32 %v41, %v40
    %vm43 = vcmp.lt.s32.totalorder %v42, 0
    %v44 = vsub.s32 0, %v42
    %v45 = vsel %vm43, %v44, %v42
    %v46 = vshrl.u32 %v45, 2
    %v47 = vand.u32 %v45, 3
    %v48 = vsub.s32 0, %v47
    %v49 = vsel %vm43, %v48, %v47
    %vm50 = vcmp.ne.s32.totalorder %v49, 0
    %vm51 = vcmp.lt.s32.totalorder %v49, 0
    %vm52 = vmand %vm51, %vm50
    %v53 = vadd.s32 %v49, 4
    %v54 = vsel %vm52, %v53, %v49
    %vm55 = vcmp.ne.s32.totalorder %v54, 0
    %vm56 = vcmp.lt.s32.totalorder %v42, 8
    %vm57 = vmand %vm55, %vm56
    %v58 = vld [vmem:[#allocation5] sm:$0xf]
    %v59 = vunpack.c.0.s8 %v58
    %v60 = vunpack.c.1.s8 %v58
    %v61 = vcvt.s32.f32 %v59
    %v62 = vcvt.s32.f32 %v60
    %v63 = vadd.f32 %v61, %v62
    %64 = vadd.xlane.f32.xlu0 %v63
    %v65 = vpop.xlane.xlu0 %64
    %v66 = vmul.f32 %v61, %v36
    %v67 = vmul.f32 %v62, %v37
    %v68 = vadd.f32 %v66, %v67
    %69 = vadd.xlane.f32.xlu0 %v68
    %v70 = vpop.xlane.xlu0 %69
    %v71 = vmul.f32 %v65, 0.9
    %v72 = vsub.f32 %v70, %v71
    %v73 = vmul.f32 %v65, 0.1
    %v74 = vsub.f32 %v73, %v70
    %vm75 = vcmp.ge.f32.partialorder %v72, 0.0
    %v76 = vmul.f32 %v72, %v72
    %v77 = vsel %vm75, %v76, 0.0
    %v78 = vadd.f32 %v77, 0.0
    %vm79 = vcmp.ge.f32.partialorder %v74, 0.0
    %v80 = vmul.f32 %v74, %v74
    %v81 = vsel %vm79, %v80, 0.0
    %v82 = vadd.f32 %v78, %v81
    %v83 = vld [vmem:[#allocation5 + $0x4] sm:$0xf]
    %v84 = vunpack.c.0.s8 %v83
    %v85 = vunpack.c.1.s8 %v83
    %v86 = vcvt.s32.f32 %v84
    %v87 = vcvt.s32.f32 %v85
    %v88 = vadd.f32 %v86, %v87
    %89 = vadd.xlane.f32.xlu0 %v88
    %v90 = vpop.xlane.xlu0 %89
    %v91 = vmul.f32 %v86, %v36
    %v92 = vmul.f32 %v87, %v37
    %v93 = vadd.f32 %v91, %v92
    %94 = vadd.xlane.f32.xlu0 %v93
    %v95 = vpop.xlane.xlu0 %94
    %v96 = vmul.f32 %v90, 0.9
    %v97 = vsub.f32 %v95, %v96
    %v98 = vmul.f32 %v90, 0.1
    %v99 = vsub.f32 %v98, %v95
    %vm100 = vcmp.ge.f32.partialorder %v97, 0.0
    %v101 = vmul.f32 %v97, %v97
    %v102 = vsel %vm100, %v101, 0.0
    %v103 = vadd.f32 %v82, %v102
    %vm104 = vcmp.ge.f32.partialorder %v99, 0.0
    %v105 = vmul.f32 %v99, %v99
    %v106 = vsel %vm104, %v105, 0.0
    %v107 = vadd.f32 %v103, %v106
    %v108 = vld [vmem:[#allocation5 + $0x8] sm:$0xf]
    %v109 = vunpack.c.0.s8 %v108
    %v110 = vunpack.c.1.s8 %v108
    %v111 = vcvt.s32.f32 %v109
    %v112 = vcvt.s32.f32 %v110
    %v113 = vadd.f32 %v111, %v112
    %114 = vadd.xlane.f32.xlu0 %v113
    %v115 = vpop.xlane.xlu0 %114
    %v116 = vmul.f32 %v111, %v36
    %v117 = vmul.f32 %v112, %v37
    %v118 = vadd.f32 %v116, %v117
    %119 = vadd.xlane.f32.xlu0 %v118
    %v120 = vpop.xlane.xlu0 %119
    %v121 = vmul.f32 %v115, 0.9
    %v122 = vsub.f32 %v120, %v121
    %v123 = vmul.f32 %v115, 0.1
    %v124 = vsub.f32 %v123, %v120
    %vm125 = vcmp.ge.f32.partialorder %v122, 0.0
    %v126 = vmul.f32 %v122, %v122
    %v127 = vsel %vm125, %v126, 0.0
    %v128 = vadd.f32 %v107, %v127
    %vm129 = vcmp.ge.f32.partialorder %v124, 0.0
    %v130 = vmul.f32 %v124, %v124
    %v131 = vsel %vm129, %v130, 0.0
    %v132 = vadd.f32 %v128, %v131
    %v133 = vsel %vm57, %v132, 0.0
    %vm134 = vcmask 7168
    %v135 = vsel %vm134, %v133, 0.0
    %136 = vadd.xlane.f32.xlu0 %v135
    %v137 = vpop.xlane.xlu0 %136
    %v138 = vrot.slane %v137, 4
    %v139 = vadd.f32 %v137, %v138
    %v140 = vrot.slane %v139, 2
    %v141 = vadd.f32 %v139, %v140
    %v142 = vrot.slane %v141, 1
    %v143 = vadd.f32 %v141, %v142
    %s144 = vtos %v143
    %v145 = vstv %s144
    %146 = vst [vmem:[#allocation7] sm:$0xff] %v145
    // Predicated region
    $region18: #{tpu_custom_call.1} parent=1 // pred_check
      _
    $region19: #{tpu_custom_call.1} parent=1 // pred_check_branch
      %148 = sbr.rel (0) target = $region21
    $region20: #{tpu_custom_call.1} parent=1 // pred_region
      %s150 = ssub.s32 128, 128
      %151 = vsyncadd [#allocation4], %s150
      %s153 = sshll.u32 [#allocation7], 4
      %s154 = int_to_ptr.vmem [resolvable:$true] %s153
      %156 = dma.vmem_to_hbm [thread:$0]  %s154, 128, %s2, [#allocation4]
    $region21: #{tpu_custom_call.1} parent=1 // pred_fallthru
      _
    // Predicated region
    $region22: #{tpu_custom_call.1} parent=1 // pred_check
      _
    $region23: #{tpu_custom_call.1} parent=1 // pred_check_branch
      %158 = sbr.rel (0) target = $region25
    $region24: #{tpu_custom_call.1} parent=1 // pred_region
      %159 = dma.done [#allocation4], 128
    $region25: #{tpu_custom_call.1} parent=1 // pred_fallthru
      _
    %160 = vsyncpa [#allocation3], 1
    %161 = vsyncpa [#allocation6], 1
    %162 = vsyncpa [#allocation4], 1

</llo_original>
